<compile_context>
chip_gen: v7x
topology: tpu7x:2x2x1
jax: 0.10.0
libtpu: 0.0.40
codegen_flags: <defaults>
</compile_context>

<pallas_src>
import functools

import numpy as np

import jax
import jax.numpy as jnp
from jax.experimental import pallas as pl
from jax.experimental.pallas import tpu as pltpu


@functools.lru_cache(maxsize=None)
def _roll_sign() -> int:
    """Pin pltpu.roll's rotation convention with a one-time 1-vreg probe.

    Returns s such that
        pltpu.roll(x, (s * d) % n, axis)[..., p] == x[..., (p + d) % n].
    """
    def probe(x_ref, o_ref):
        o_ref[...] = pltpu.roll(x_ref[...], 1, axis=1)

    x = jnp.arange(128, dtype=jnp.float32).reshape(1, 128)
    y = pl.pallas_call(probe,
                       out_shape=jax.ShapeDtypeStruct((1, 128), jnp.float32))(x)
    # np.roll convention: element 0 of the result is the old last element.
    return -1 if float(y[0, 0]) == 127.0 else 1


def _sepconv_kernel(x_ref, wdw_ref, mask_ref, wpw_ref, bias_ref, o_ref, *,
                    shifts, act):
    # x_ref:    (Cin, H*W)     one image, flat spatial on lanes
    # wdw_ref:  (Cin, KH*KW)   depthwise taps (unreplicated)
    # mask_ref: (KH*KW, H*W)   0/1 boundary-validity mask per tap
    # wpw_ref:  (Cout, Cin)    pointwise weight with BN scale folded in
    # bias_ref: (Cout, 1)      folded bias (dw bias + pw bias + BN)
    # o_ref:    (Cout, H*W)    lane-dense output (unmasked stores)
    x = x_ref[...]
    if act:
        x = jnp.maximum(x, 0.0)          # module applies ReLU to the *input*

    # ---- depthwise KHxKW: rolled copy * boundary mask * per-channel scalar.
    # Entirely in registers (XLU rolls + VPU FMAs); no scratch, no stores.
    acc = jnp.zeros(x.shape, dtype=jnp.float32)
    for t, s in enumerate(shifts):
        shifted = x if s == 0 else pltpu.roll(x, s, axis=1)
        m_t = mask_ref[t:t + 1, :]        # (1, H*W)  zero out wrapped lanes
        w_t = wdw_ref[:, t:t + 1]         # (Cin, 1)  per-channel tap weight
        acc = acc + (shifted * m_t) * w_t

    # ---- pointwise 1x1 conv + folded BatchNorm: one MXU matmul per image ----
    y = jnp.dot(wpw_ref[...], acc, preferred_element_type=jnp.float32)
    o_ref[...] = (y + bias_ref[...]).astype(o_ref.dtype)


def separable_conv_forward(x, w_dw, b_dw, w_pw, b_pw, gamma, beta,
                           running_mean, running_var, *, act=False, eps=1e-5):
    """SeparableConv forward (eval-mode BatchNorm).

    x:    (N, Cin, H, W)
    w_dw: (Cin, KH, KW)   depthwise weight (PyTorch (Cin,1,KH,KW) squeezed)
    b_dw: (Cin,)
    w_pw: (Cout, Cin)     pointwise weight (PyTorch (Cout,Cin,1,1) squeezed)
    b_pw: (Cout,)
    """
    N, Cin, H, W = x.shape
    Cout = w_pw.shape[0]
    KH, KW = w_dw.shape[-2:]
    pad = (KH - 1) // 2
    HW = H * W

    # ---- one-time weight/bias folding (weights only, not activations) ----
    scale = gamma / jnp.sqrt(running_var + eps)                  # (Cout,)
    w_eff = (scale[:, None] * w_pw).astype(jnp.float32)          # (Cout, Cin)
    bias_total = b_pw + w_pw @ b_dw                              # fold dw bias
    bias_eff = (beta + scale * (bias_total - running_mean))
    bias_eff = bias_eff.reshape(Cout, 1).astype(jnp.float32)

    # ---- static per-tap lane shifts + boundary masks (host-side, tiny) ----
    sgn = _roll_sign()
    hh, ww = np.divmod(np.arange(HW), W)
    shifts, masks = [], []
    for kh in range(KH):
        for kw in range(KW):
            dh, dw = kh - pad, kw - pad
            d = dh * W + dw                    # want shifted[p] == x[p + d]
            shifts.append(int((sgn * d) % HW))
            masks.append((hh + dh >= 0) & (hh + dh < H) &
                         (ww + dw >= 0) & (ww + dw < W))
    masks = jnp.asarray(np.stack(masks), dtype=jnp.float32)      # (KH*KW, HW)
    wdw_flat = w_dw.reshape(Cin, KH * KW).astype(jnp.float32)

    # free, contiguous reshape: NCHW -> (N, Cin, H*W); no transpose, no pad
    x_flat = x.reshape(N, Cin, HW).astype(jnp.float32)

    kernel = functools.partial(_sepconv_kernel, shifts=tuple(shifts), act=act)

    flops = 2 * N * HW * (Cin * KH * KW + Cout * Cin)
    bytes_accessed = 4 * (N * Cin * HW + N * Cout * HW + Cin * KH * KW
                          + KH * KW * HW + Cout * Cin + Cout)

    out_flat = pl.pallas_call(
        kernel,
        out_shape=jax.ShapeDtypeStruct((N, Cout, HW), jnp.float32),
        grid=(N,),                                 # one image per step
        in_specs=[
            pl.BlockSpec((None, Cin, HW), lambda i: (i, 0, 0)),
            pl.BlockSpec((Cin, KH * KW), lambda i: (0, 0)),
            pl.BlockSpec((KH * KW, HW), lambda i: (0, 0)),
            pl.BlockSpec((Cout, Cin), lambda i: (0, 0)),
            pl.BlockSpec((Cout, 1), lambda i: (0, 0)),
        ],
        out_specs=pl.BlockSpec((None, Cout, HW), lambda i: (i, 0, 0)),
        compiler_params=pltpu.CompilerParams(
            dimension_semantics=("parallel",),
            vmem_limit_bytes=32 * 1024 * 1024),
        cost_estimate=pl.CostEstimate(flops=flops, transcendentals=0,
                                      bytes_accessed=bytes_accessed),
    )(x_flat, wdw_flat, masks, w_eff, bias_eff)

    return out_flat.reshape(N, Cout, H, W)       # free reshape back to NCHW


def _reference(x, w_dw, b_dw, w_pw, b_pw, gamma, beta, running_mean,
               running_var, *, act=False, eps=1e-5):
    N, Cin, H, W = x.shape
    Cout = w_pw.shape[0]
    KH, KW = w_dw.shape[-2:]
    pad = (KH - 1) // 2
    if act:
        x = jnp.maximum(x, 0.0)
    y = jax.lax.conv_general_dilated(
        x, w_dw.reshape(Cin, 1, KH, KW), window_strides=(1, 1),
        padding=((pad, pad), (pad, pad)),
        dimension_numbers=("NCHW", "OIHW", "NCHW"),
        feature_group_count=Cin)
    y = y + b_dw[None, :, None, None]
    y = jax.lax.conv_general_dilated(
        y, w_pw.reshape(Cout, Cin, 1, 1), window_strides=(1, 1),
        padding=((0, 0), (0, 0)),
        dimension_numbers=("NCHW", "OIHW", "NCHW"))
    y = y + b_pw[None, :, None, None]
    y = (y - running_mean[None, :, None, None]) / jnp.sqrt(
        running_var[None, :, None, None] + eps)
    y = y * gamma[None, :, None, None] + beta[None, :, None, None]
    return y


if __name__ == "__main__":
    # SeparableConv(in_channels=4, out_channels=8)
    N, Cin, H, W = 2, 4, 16, 16
    Cout, KH, KW = 8, 3, 3

    key = jax.random.PRNGKey(0)
    keys = jax.random.split(key, 9)
    x = jax.random.normal(keys[0], (N, Cin, H, W), dtype=jnp.float32)
    w_dw = jax.random.normal(keys[1], (Cin, KH, KW), dtype=jnp.float32) * 0.2
    b_dw = jax.random.normal(keys[2], (Cin,), dtype=jnp.float32) * 0.1
    w_pw = jax.random.normal(keys[3], (Cout, Cin), dtype=jnp.float32) * 0.2
    b_pw = jax.random.normal(keys[4], (Cout,), dtype=jnp.float32) * 0.1
    gamma = 1.0 + 0.1 * jax.random.normal(keys[5], (Cout,), dtype=jnp.float32)
    beta = 0.1 * jax.random.normal(keys[6], (Cout,), dtype=jnp.float32)
    running_mean = 0.1 * jax.random.normal(keys[7], (Cout,), dtype=jnp.float32)
    running_var = jnp.abs(1.0 + 0.1 * jax.random.normal(keys[8], (Cout,),
                                                        dtype=jnp.float32))

    for act in (False, True):
        out = separable_conv_forward(x, w_dw, b_dw, w_pw, b_pw, gamma, beta,
                                     running_mean, running_var, act=act)
        out = jax.block_until_ready(out)
        ref = _reference(x, w_dw, b_dw, w_pw, b_pw, gamma, beta, running_mean,
                         running_var, act=act)
        assert out.shape == (N, Cout, H, W)
        assert jnp.allclose(out, ref, atol=2e-4, rtol=2e-4), float(
            jnp.max(jnp.abs(out - ref)))

    print("KERNEL_OK")
</pallas_src>

<mosaic_0001>
module attributes {stable_mosaic.version = 11 : i64} {
  func.func @probe(%arg0: memref<1x128xf32, #tpu.memory_space<vmem>>, %arg1: memref<1x128xf32, #tpu.memory_space<vmem>>) attributes {dimension_semantics = [], scalar_prefetch = 0 : i64, scratch_operands = 0 : i64, tpu.core_type = #tpu.core_type<tc>} {
    %c0 = arith.constant 0 : index
    %c0_0 = arith.constant 0 : index
    %0 = vector.load %arg0[%c0, %c0_0] : memref<1x128xf32, #tpu.memory_space<vmem>>, vector<1x128xf32>
    %c1_i32 = arith.constant 1 : i32
    %1 = tpu.dynamic_rotate %0 by %c1_i32 dim 1 : vector<1x128xf32>, i32 -> vector<1x128xf32>
    %c0_1 = arith.constant 0 : index
    %c0_2 = arith.constant 0 : index
    %2 = vector.load %arg1[%c0_1, %c0_2] : memref<1x128xf32, #tpu.memory_space<vmem>>, vector<1x128xf32>
    tpu.vector_store %arg1[%c0_1, %c0_2], %1 {strides = array<i32>} : memref<1x128xf32, #tpu.memory_space<vmem>>, vector<1x128xf32>,
    return
  }
}

</mosaic_0001>

<llo_original>
// kernel: tpu_custom_call.1
$region0: #{tpu_custom_call.1}
  #allocation0 [shape = 'u32[]', space=smem, size = 0x4, offset = 0x4, fixed_abs, tag = 'smem constant byte address 0x4 - core index']
  #allocation1 [shape = 'u32[144,128]{1,0:T(1,128)}', space=vmem, size = 0x12000, scoped, tag = 'internal scratch']
  %s0 = inlined_call_operand.hbm [shape: f32[1,128], index: 0, kind: input, shape index: {}]
  %s1 = inlined_call_operand.hbm [shape: f32[1,128], index: 1, kind: output, shape index: {}]
  %s2 = sld [smem:[#allocation0]]
  $region18: #{tpu_custom_call.1} parent=0
    _
  %s4 = ssub.s32 1, %s2
  %s5 = scalar_select 0, %s4, %s2
  $region1: #{tpu_custom_call.1} parent=0
    #allocation2 [shape = 'u8[512]{0}', space=vmem, size = 0x400, scoped, tag = 'input window, operand 0, single buffered']
    #allocation3 [shape = 's32[1]{0}', space=sflag, size = 0x4, scoped, tag = 'scoped memory for tpu_custom_call.1']
    #allocation4 [shape = 's32[1]{0}', space=sflag, size = 0x4, scoped, tag = 'scoped memory for tpu_custom_call.1']
    #allocation5 [shape = 'u8[512]{0}', space=vmem, size = 0x400, scoped, tag = 'output window, operand 0, single buffered']
    %6 = vsyncpa [#allocation3], 0
    %7 = vsyncpa [#allocation4], 0
    // Predicated region
    $region2: #{tpu_custom_call.1} parent=1 // pred_check
      _
    $region3: #{tpu_custom_call.1} parent=1 // pred_check_branch
      %9 = sbr.rel (0) target = $region5
    $region4: #{tpu_custom_call.1} parent=1 // pred_region
      %s11 = ssub.s32 16, 16
      %12 = vsyncadd [#allocation3], %s11
      %s14 = sshll.u32 [#allocation2], 4
      %s15 = int_to_ptr.vmem [resolvable:$true] %s14
      %17 = dma.hbm_to_vmem [thread:$0]  %s0, 16, %s15, [#allocation3]
    $region5: #{tpu_custom_call.1} parent=1 // pred_fallthru
      _
    // Predicated region
    $region6: #{tpu_custom_call.1} parent=1 // pred_check
      _
    $region7: #{tpu_custom_call.1} parent=1 // pred_check_branch
      %19 = sbr.rel (0) target = $region9
    $region8: #{tpu_custom_call.1} parent=1 // pred_region
      %20 = dma.done [#allocation3], 16
    $region9: #{tpu_custom_call.1} parent=1 // pred_fallthru
      _
    %v21 = vld [vmem:[#allocation2] sm:$0x1]
    %22 = vrot.lane.b32.xlu0 %v21, 1
    %v23 = vpop.permute.xlu0 %22
    %24 = vst [vmem:[#allocation5] sm:$0x1] %v23
    // Predicated region
    $region10: #{tpu_custom_call.1} parent=1 // pred_check
      _
    $region11: #{tpu_custom_call.1} parent=1 // pred_check_branch
      %26 = sbr.rel (0) target = $region13
    $region12: #{tpu_custom_call.1} parent=1 // pred_region
      %s28 = ssub.s32 16, 16
      %29 = vsyncadd [#allocation4], %s28
      %s31 = sshll.u32 [#allocation5], 4
      %s32 = int_to_ptr.vmem [resolvable:$true] %s31
      %34 = dma.vmem_to_hbm [thread:$0]  %s32, 16, %s1, [#allocation4]
    $region13: #{tpu_custom_call.1} parent=1 // pred_fallthru
      _
    // Predicated region
    $region14: #{tpu_custom_call.1} parent=1 // pred_check
      _
    $region15: #{tpu_custom_call.1} parent=1 // pred_check_branch
      %36 = sbr.rel (0) target = $region17
    $region16: #{tpu_custom_call.1} parent=1 // pred_region
      %37 = dma.done [#allocation4], 16
    $region17: #{tpu_custom_call.1} parent=1 // pred_fallthru
      _
    %38 = vsyncpa [#allocation3], 1
    %39 = vsyncpa [#allocation4], 1

</llo_original>
